<compile_context>
chip_gen: v7x
topology: tpu7x:2x2x1
jax: 0.10.0
libtpu: 0.0.40
codegen_flags: <defaults>
</compile_context>

<pallas_src>
import functools

import jax
import jax.numpy as jnp
from jax import lax
from jax.experimental import pallas as pl
from jax.experimental.pallas import tpu as pltpu

BN_EPS = 1e-5
_INV_SQRT2 = 0.7071067811865476          # 1/sqrt(2)   (exact-erf GELU)
_SQRT_2_OVER_PI = 0.7978845608028654     # sqrt(2/pi)  (tanh GELU)
_GELU_TANH_C = 0.044715

# Scoped-VMEM cap handed to Mosaic.  64 MiB is safe on every generation (v7x
# has 64 MiB physical per TensorCore); on v6e/v5e (128 MiB physical) it may be
# raised together with tile_m (see patch_embeddings docstring).
_VMEM_LIMIT_BYTES = 64 * 1024 * 1024


def _round_up(a: int, b: int) -> int:
    return (a + b - 1) // b * b


def _gelu(x, approximate):
    if approximate:
        # tanh form: the tanh runs on the EUP (its own VLIW slot), leaving the
        # VALU free -> the kernel stays memory-bound instead of erf-bound.
        inner = _SQRT_2_OVER_PI * (x + _GELU_TANH_C * (x * x * x))
        return 0.5 * x * (1.0 + jnp.tanh(inner))
    # Exact erf GELU (matches torch.nn.GELU() default); the erf polynomial is
    # a long VALU chain, so only use it when exact parity is required.
    return 0.5 * x * (1.0 + lax.erf(x * jnp.float32(_INV_SQRT2)))


def _stats_kernel(p_ref, w_ref, b_ref, stat_ref, *, tile_m, m_real, m_pad,
                  approximate):
    # p_ref: (tile_m, K_pad) bf16  w_ref: (K_pad, D_pad) bf16 (VMEM-resident)
    # b_ref: (1, D_pad) f32 (resident)
    # stat_ref: (1, 2, D_pad) f32 -- per-tile partial [sum, sumsq] rows,
    # reduced outside the kernel (keeps the M grid axis fully "parallel").
    x = jnp.dot(p_ref[...], w_ref[...], preferred_element_type=jnp.float32)
    x = _gelu(x + b_ref[...], approximate)

    def write(v):
        s = jnp.sum(v, axis=0, keepdims=True)
        q = jnp.sum(v * v, axis=0, keepdims=True)
        stat_ref[...] = jnp.concatenate([s, q], axis=0)[None]

    if m_pad == m_real:
        # Static: no padded rows exist anywhere -> no mask ops at all.
        write(x)
    else:
        i = pl.program_id(0)
        n_m = pl.num_programs(0)

        @pl.when(i < n_m - 1)        # full tiles: unmasked sums
        def _():
            write(x)

        @pl.when(i == n_m - 1)       # only the last tile holds padded rows
        def _():
            rows = i * tile_m + lax.broadcasted_iota(jnp.int32, (tile_m, 1), 0)
            write(jnp.where(rows < m_real, x, 0.0))


def _normalize_kernel(p_ref, w_ref, b_ref, scale_ref, shift_ref, o_ref, *,
                      approximate):
    # Recompute matmul + bias + GELU (cheaper than spilling: K << dim and the
    # op is memory-bound), then apply the folded BatchNorm affine and store
    # in o_ref.dtype (bf16 by default -> half the output HBM bytes).
    x = jnp.dot(p_ref[...], w_ref[...], preferred_element_type=jnp.float32)
    x = _gelu(x + b_ref[...], approximate)
    o_ref[...] = (x * scale_ref[...] + shift_ref[...]).astype(o_ref.dtype)


def patch_embeddings(x, conv_w, conv_b, gamma, beta, patch_size, *,
                     tile_m=1024, matmul_dtype=jnp.bfloat16,
                     out_dtype=jnp.bfloat16, gelu_approximate=True,
                     nchw=False):
    """ConvMixer PatchEmbeddings: BatchNorm2d(GELU(Conv2d(stride=patch)(x))).

    x: (N, C, H, W) f32.  conv_w: (dim, C, p, p).  conv_b/gamma/beta: (dim,).
    Returns channels-last (N, Hp, Wp, dim) in `out_dtype` (default bf16);
    set nchw=True for the PyTorch (N, dim, Hp, Wp) layout (costs one extra
    transpose pass over the output -- avoid it if the consumer accepts NHWC).

    tile_m: rows of the (M, K) patch matrix per grid step (rounded to a
    multiple of 16, the native bf16 sublane tile).  The default 1024 keeps
    the double-buffered tiles plus f32 temporaries inside v7x's 64 MiB VMEM
    at dim <= 1536; on v6e/v5e (128 MiB physical) it may be raised to 2048
    together with _VMEM_LIMIT_BYTES to further amortize per-step overhead.
    """
    N, C, H, W = x.shape
    dim = conv_w.shape[0]
    p = patch_size
    Hp, Wp = H // p, W // p
    M = N * Hp * Wp
    K = C * p * p

    K_pad = _round_up(K, 128)
    D_pad = _round_up(dim, 128)
    tile_m = _round_up(max(16, min(int(tile_m), _round_up(M, 16))), 16)
    M_pad = _round_up(M, tile_m)
    n_m = M_pad // tile_m

    # --- XLA glue: patchify + cast (bf16 BEFORE the pad: the relayout copies
    # move half the bytes) -----------------------------------------------------
    # TODO(synk): gathering patches in-kernel from NCHW x with an (n, hp) grid
    # and rectangular (1, C, p, W) blocks would remove this extra HBM round
    # trip over the (M, K) data entirely.
    patches = (x.astype(matmul_dtype)
                .reshape(N, C, Hp, p, Wp, p)
                .transpose(0, 2, 4, 1, 3, 5)
                .reshape(M, K))
    patches = jnp.pad(patches, ((0, M_pad - M), (0, K_pad - K)))
    w_mat = jnp.pad(conv_w.reshape(dim, K).T.astype(matmul_dtype),
                    ((0, K_pad - K), (0, D_pad - dim)))
    b_row = jnp.pad(conv_b.astype(jnp.float32), (0, D_pad - dim)).reshape(1, D_pad)

    in_item = jnp.dtype(matmul_dtype).itemsize
    out_item = jnp.dtype(out_dtype).itemsize
    matmul_flops = 2 * M_pad * K_pad * D_pad

    # Resident operands: constant index_map -> fetched once, stay in VMEM.
    # TODO(synk): pipeline_mode=pl.Buffered(1) on these would also drop their
    # second pipeline buffer (~K_pad*D_pad*2 B of extra VMEM headroom on v7x).
    patch_spec = pl.BlockSpec((tile_m, K_pad), lambda i: (i, 0))
    resident_w = pl.BlockSpec((K_pad, D_pad), lambda i: (0, 0))
    resident_row = pl.BlockSpec((1, D_pad), lambda i: (0, 0))
    compiler_params = pltpu.CompilerParams(
        dimension_semantics=("parallel",),      # megacore / v7x 2-TC friendly
        vmem_limit_bytes=_VMEM_LIMIT_BYTES)

    # --- pass 1: per-tile partial BatchNorm statistics -------------------------
    stats = pl.pallas_call(
        functools.partial(_stats_kernel, tile_m=tile_m, m_real=M, m_pad=M_pad,
                          approximate=gelu_approximate),
        out_shape=jax.ShapeDtypeStruct((n_m, 2, D_pad), jnp.float32),
        grid_spec=pltpu.PrefetchScalarGridSpec(
            num_scalar_prefetch=0,
            grid=(n_m,),
            in_specs=[patch_spec, resident_w, resident_row],
            out_specs=pl.BlockSpec((1, 2, D_pad), lambda i: (i, 0, 0)),
        ),
        compiler_params=compiler_params,
        cost_estimate=pl.CostEstimate(
            flops=matmul_flops,
            transcendentals=M_pad * D_pad,
            bytes_accessed=(M_pad * K_pad * in_item + K_pad * D_pad * in_item
                            + D_pad * 4 + n_m * 2 * D_pad * 4)),
    )(patches, w_mat, b_row)

    # --- tiny XLA reduction: partials -> per-channel scale / shift -------------
    # Per-tile partials combined by a tree reduce in f32 (better conditioned
    # than one long sequential accumulation); var clamped at 0 to guard the
    # E[x^2] - mean^2 cancellation.
    tot = jnp.sum(stats, axis=0)                       # (2, D_pad) f32
    mean = tot[0] / M
    var = jnp.maximum(tot[1] / M - mean * mean, 0.0)
    rstd = lax.rsqrt(var + jnp.float32(BN_EPS))
    g_pad = jnp.pad(gamma.astype(jnp.float32), (0, D_pad - dim))
    be_pad = jnp.pad(beta.astype(jnp.float32), (0, D_pad - dim))
    scale = (rstd * g_pad).reshape(1, D_pad)
    shift = (be_pad - mean * rstd * g_pad).reshape(1, D_pad)

    # --- pass 2: recompute + normalize, bf16 lane-dense store ------------------
    out = pl.pallas_call(
        functools.partial(_normalize_kernel, approximate=gelu_approximate),
        out_shape=jax.ShapeDtypeStruct((M_pad, D_pad), out_dtype),
        grid_spec=pltpu.PrefetchScalarGridSpec(
            num_scalar_prefetch=0,
            grid=(n_m,),
            in_specs=[patch_spec, resident_w, resident_row, resident_row,
                      resident_row],
            out_specs=pl.BlockSpec((tile_m, D_pad), lambda i: (i, 0)),
        ),
        compiler_params=compiler_params,
        cost_estimate=pl.CostEstimate(
            flops=matmul_flops,
            transcendentals=M_pad * D_pad,
            bytes_accessed=(M_pad * K_pad * in_item + K_pad * D_pad * in_item
                            + 3 * D_pad * 4 + M_pad * D_pad * out_item)),
    )(patches, w_mat, b_row, scale, shift)

    # Channels-last result.  For production ConvMixer shapes (dim a multiple of
    # 128, M a multiple of tile_m) the slice+reshape below is pure metadata --
    # the old full NCHW f32 transpose pass over the output is gone.
    y = out[:M, :dim].reshape(N, Hp, Wp, dim)
    if nchw:
        # Strict PyTorch layout parity; one extra HBM pass over the output.
        y = y.transpose(0, 3, 1, 2)
    return y


def _reference(x, conv_w, conv_b, gamma, beta, patch_size, *,
               matmul_dtype=jnp.float32, gelu_approximate=False):
    """Pure-JAX NCHW reference.  matmul_dtype=bf16 matches the kernel's MXU
    operand precision; gelu_approximate must match the kernel setting."""
    y = lax.conv_general_dilated(
        x.astype(matmul_dtype), conv_w.astype(matmul_dtype),
        window_strides=(patch_size, patch_size),
        padding="VALID",
        dimension_numbers=("NCHW", "OIHW", "NCHW"),
        preferred_element_type=jnp.float32,
    ) + conv_b[None, :, None, None]
    y = jax.nn.gelu(y, approximate=gelu_approximate)
    mean = jnp.mean(y, axis=(0, 2, 3), keepdims=True)
    var = jnp.mean((y - mean) ** 2, axis=(0, 2, 3), keepdims=True)
    yn = (y - mean) / jnp.sqrt(var + BN_EPS)
    return yn * gamma[None, :, None, None] + beta[None, :, None, None]


if __name__ == "__main__":
    key = jax.random.PRNGKey(0)
    kx, kw, kb, kx2 = jax.random.split(key, 4)

    # ---- Config 1: batch=2, in_ch=4, 16x16, patch=4, dim=32 -------------------
    # Exact-erf GELU (PyTorch nn.GELU default) + f32 output for a tight check
    # against a reference with matching matmul precision (bf16 ops, f32 acc).
    N, C, H, W, p, dim = 2, 4, 16, 16, 4, 32
    x = jax.random.normal(kx, (N, C, H, W), dtype=jnp.float32)
    conv_w = jax.random.normal(kw, (dim, C, p, p), dtype=jnp.float32) * 0.05
    conv_b = jax.random.normal(kb, (dim,), dtype=jnp.float32) * 0.05
    gamma = jnp.ones((dim,), dtype=jnp.float32)   # BatchNorm2d default weight
    beta = jnp.zeros((dim,), dtype=jnp.float32)   # BatchNorm2d default bias

    out = patch_embeddings(x, conv_w, conv_b, gamma, beta, p,
                           out_dtype=jnp.float32, gelu_approximate=False)
    out = jax.block_until_ready(out)
    assert out.shape == (N, H // p, W // p, dim)

    ref = _reference(x, conv_w, conv_b, gamma, beta, p,
                     matmul_dtype=jnp.bfloat16, gelu_approximate=False)
    ref_nhwc = ref.transpose(0, 2, 3, 1)
    d1 = float(jnp.max(jnp.abs(out - ref_nhwc)))
    assert jnp.allclose(out, ref_nhwc, atol=3e-3, rtol=3e-3), \
        f"max abs diff vs bf16-matched reference = {d1}"

    ref32 = _reference(x, conv_w, conv_b, gamma, beta, p).transpose(0, 2, 3, 1)
    d2 = float(jnp.max(jnp.abs(out - ref32)))
    assert jnp.allclose(out, ref32, atol=1e-1, rtol=1e-1), \
        f"max abs diff vs f32 reference = {d2}"

    # Optional strict-layout path matches the PyTorch NCHW output.
    out_nchw = jax.block_until_ready(
        patch_embeddings(x, conv_w, conv_b, gamma, beta, p,
                         out_dtype=jnp.float32, gelu_approximate=False,
                         nchw=True))
    assert out_nchw.shape == ref.shape
    assert jnp.allclose(out_nchw, ref, atol=3e-3, rtol=3e-3)

    # ---- Config 2: default fast path (tanh GELU, bf16 out) with multiple M
    # tiles and padded rows/channels (H=W=20 -> M=50, tile_m=16, dim=32<128) ---
    H2 = W2 = 20
    x2 = jax.random.normal(kx2, (N, C, H2, W2), dtype=jnp.float32)
    out2 = patch_embeddings(x2, conv_w, conv_b, gamma, beta, p, tile_m=16)
    out2 = jax.block_until_ready(out2)
    assert out2.shape == (N, H2 // p, W2 // p, dim)
    assert out2.dtype == jnp.bfloat16

    ref2 = _reference(x2, conv_w, conv_b, gamma, beta, p,
                      matmul_dtype=jnp.bfloat16, gelu_approximate=True)
    ref2_nhwc = ref2.transpose(0, 2, 3, 1)
    d3 = float(jnp.max(jnp.abs(out2.astype(jnp.float32) - ref2_nhwc)))
    assert jnp.allclose(out2.astype(jnp.float32), ref2_nhwc,
                        atol=3e-2, rtol=3e-2), \
        f"max abs diff vs bf16/tanh-matched reference = {d3}"

    print("KERNEL_OK")
</pallas_src>

<mosaic_0001>
module attributes {stable_mosaic.version = 11 : i64} {
  func.func @_stats_kernel(%arg0: i32, %arg1: memref<32x128xbf16, #tpu.memory_space<vmem>>, %arg2: memref<128x128xbf16, #tpu.memory_space<vmem>>, %arg3: memref<1x128xf32, #tpu.memory_space<vmem>>, %arg4: memref<1x2x128xf32, #tpu.memory_space<vmem>>) attributes {dimension_semantics = [#tpu.dimension_semantics<parallel>], iteration_bounds = array<i64: 1>, scalar_prefetch = 0 : i64, scratch_operands = 0 : i64, tpu.core_type = #tpu.core_type<tc>, window_params = [{transform_indices = @transform_0, window_bounds = array<i64: 32, 128>}, {pipeline_mode = #tpu.pipeline_mode<synchronous>, transform_indices = @transform_1, window_bounds = array<i64: 128, 128>}, {pipeline_mode = #tpu.pipeline_mode<synchronous>, transform_indices = @transform_2, window_bounds = array<i64: 1, 128>}, {transform_indices = @transform_3, window_bounds = array<i64: 1, 2, 128>}]} {
    %c0 = arith.constant 0 : index
    %c0_0 = arith.constant 0 : index
    %0 = vector.load %arg1[%c0, %c0_0] : memref<32x128xbf16, #tpu.memory_space<vmem>>, vector<32x128xbf16>
    %c0_1 = arith.constant 0 : index
    %c0_2 = arith.constant 0 : index
    %1 = vector.load %arg2[%c0_1, %c0_2] : memref<128x128xbf16, #tpu.memory_space<vmem>>, vector<128x128xbf16>
    %cst = arith.constant dense<0.000000e+00> : vector<32x128xf32>
    %2 = tpu.matmul %0, %1, %cst {dimension_numbers = #tpu.dot_dimension_numbers<[1], [0], [0], [1], [0, 0, 1, 1], [], []>} : vector<32x128xbf16>, vector<128x128xbf16>, vector<32x128xf32> -> vector<32x128xf32>
    %c0_3 = arith.constant 0 : index
    %c0_4 = arith.constant 0 : index
    %3 = vector.load %arg3[%c0_3, %c0_4] : memref<1x128xf32, #tpu.memory_space<vmem>>, vector<1x128xf32>
    %4 = vector.broadcast %3 : vector<1x128xf32> to vector<32x128xf32>
    %5 = arith.addf %2, %4 : vector<32x128xf32>
    %cst_5 = arith.constant 5.000000e-01 : f32
    %6 = vector.broadcast %cst_5 : f32 to vector<32x128xf32>
    %7 = arith.mulf %6, %5 : vector<32x128xf32>
    %cst_6 = arith.constant 0.707106769 : f32
    %8 = vector.broadcast %cst_6 : f32 to vector<32x128xf32>
    %9 = arith.mulf %5, %8 : vector<32x128xf32>
    %10 = math.erf %9 : vector<32x128xf32>
    %cst_7 = arith.constant 1.000000e+00 : f32
    %11 = vector.broadcast %cst_7 : f32 to vector<32x128xf32>
    %12 = arith.addf %11, %10 : vector<32x128xf32>
    %13 = arith.mulf %7, %12 : vector<32x128xf32>
    %cst_8 = arith.constant dense<0.000000e+00> : vector<128xf32>
    %14 = vector.multi_reduction <add>, %13, %cst_8 [0] : vector<32x128xf32> to vector<128xf32>
    %15 = vector.shape_cast %14 : vector<128xf32> to vector<1x128xf32>
    %16 = arith.mulf %13, %13 : vector<32x128xf32>
    %cst_9 = arith.constant dense<0.000000e+00> : vector<128xf32>
    %17 = vector.multi_reduction <add>, %16, %cst_9 [0] : vector<32x128xf32> to vector<128xf32>
    %18 = vector.shape_cast %17 : vector<128xf32> to vector<1x128xf32>
    %19 = tpu.concatenate %15, %18 in 0 : vector<1x128xf32>, vector<1x128xf32> -> vector<2x128xf32>
    %20 = vector.shape_cast %19 : vector<2x128xf32> to vector<1x2x128xf32>
    %c0_10 = arith.constant 0 : index
    %c0_11 = arith.constant 0 : index
    %c0_12 = arith.constant 0 : index
    %21 = vector.load %arg4[%c0_10, %c0_11, %c0_12] : memref<1x2x128xf32, #tpu.memory_space<vmem>>, vector<1x2x128xf32>
    tpu.vector_store %arg4[%c0_10, %c0_11, %c0_12], %20 {strides = array<i32>} : memref<1x2x128xf32, #tpu.memory_space<vmem>>, vector<1x2x128xf32>,
    return
  }
  func.func @transform_0(%arg0: i32) -> (i32, i32) {
    %c0_i32 = arith.constant 0 : i32
    %c0_i32_0 = arith.constant 0 : i32
    return %arg0, %c0_i32 : i32, i32
  }
  func.func @transform_1(%arg0: i32) -> (i32, i32) {
    %c0_i32 = arith.constant 0 : i32
    %c0_i32_0 = arith.constant 0 : i32
    %c0_i32_1 = arith.constant 0 : i32
    return %c0_i32, %c0_i32_0 : i32, i32
  }
  func.func @transform_2(%arg0: i32) -> (i32, i32) {
    %c0_i32 = arith.constant 0 : i32
    %c0_i32_0 = arith.constant 0 : i32
    %c0_i32_1 = arith.constant 0 : i32
    return %c0_i32, %c0_i32_0 : i32, i32
  }
  func.func @transform_3(%arg0: i32) -> (i32, i32, i32) {
    %c0_i32 = arith.constant 0 : i32
    %c0_i32_0 = arith.constant 0 : i32
    %c0_i32_1 = arith.constant 0 : i32
    return %arg0, %c0_i32, %c0_i32_0 : i32, i32, i32
  }
}

</mosaic_0001>

<llo_original>
// kernel: tpu_custom_call.1
$region0: #{tpu_custom_call.1}
  #allocation0 [shape = 'u32[]', space=smem, size = 0x4, offset = 0x4, fixed_abs, tag = 'smem constant byte address 0x4 - core index']
  #allocation1 [shape = 'u32[144,128]{1,0:T(1,128)}', space=vmem, size = 0x12000, scoped, tag = 'internal scratch']
  %s0 = inlined_call_operand.hbm [shape: bf16[32,128], index: 0, kind: input, shape index: {}]
  %s1 = inlined_call_operand.hbm [shape: bf16[128,128], index: 1, kind: input, shape index: {}]
  %s2 = inlined_call_operand.hbm [shape: f32[1,128], index: 2, kind: input, shape index: {}]
  %s3 = inlined_call_operand.hbm [shape: f32[1,2,128], index: 3, kind: output, shape index: {}]
  %s4 = sld [smem:[#allocation0]]
  $region34: #{tpu_custom_call.1} parent=0
    _
  %s6 = ssub.s32 1, %s4
  %s7 = scalar_select 0, %s6, %s4
  $region1: #{tpu_custom_call.1} parent=0
    #allocation2 [shape = 'u8[8192]{0}', space=vmem, size = 0x2000, scoped, tag = 'input window, operand 0, single buffered']
    #allocation3 [shape = 's32[1]{0}', space=sflag, size = 0x4, scoped, tag = 'scoped memory for tpu_custom_call.1']
    #allocation4 [shape = 's32[1]{0}', space=sflag, size = 0x4, scoped, tag = 'scoped memory for tpu_custom_call.1']
    #allocation5 [shape = 'u8[32768]{0}', space=vmem, size = 0x8000, scoped, tag = 'input window, operand 1, single buffered']
    #allocation6 [shape = 's32[1]{0}', space=sflag, size = 0x4, scoped, tag = 'scoped memory for tpu_custom_call.1']
    #allocation7 [shape = 'u8[512]{0}', space=vmem, size = 0x400, scoped, tag = 'input window, operand 2, single buffered']
    #allocation8 [shape = 'u8[1024]{0}', space=vmem, size = 0x400, scoped, tag = 'output window, operand 0, single buffered']
    %8 = vsyncpa [#allocation3], 0
    %9 = vsyncpa [#allocation6], 0
    %10 = vsyncpa [#allocation4], 0
    // Predicated region
    $region2: #{tpu_custom_call.1} parent=1 // pred_check
      _
    $region3: #{tpu_custom_call.1} parent=1 // pred_check_branch
      %12 = sbr.rel (0) target = $region5
    $region4: #{tpu_custom_call.1} parent=1 // pred_region
      %s14 = ssub.s32 256, 256
      %15 = vsyncadd [#allocation3], %s14
      %s16 = sshll.u32 [#allocation2], 4
      %s17 = int_to_ptr.vmem [resolvable:$true] %s16
      %22 = dma.hbm_to_vmem [thread:$0]  %s0, 256, %s17, [#allocation3], 64, 64, 4
    $region5: #{tpu_custom_call.1} parent=1 // pred_fallthru
      _
    // Predicated region
    $region6: #{tpu_custom_call.1} parent=1 // pred_check
      _
    $region7: #{tpu_custom_call.1} parent=1 // pred_check_branch
      %24 = sbr.rel (0) target = $region9
    $region8: #{tpu_custom_call.1} parent=1 // pred_region
      %s26 = ssub.s32 1024, 1024
      %27 = vsyncadd [#allocation6], %s26
      %s28 = sshll.u32 [#allocation5], 4
      %s29 = int_to_ptr.vmem [resolvable:$true] %s28
      %34 = dma.hbm_to_vmem [thread:$0]  %s1, 1024, %s29, [#allocation6], 64, 64, 4
    $region9: #{tpu_custom_call.1} parent=1 // pred_fallthru
      _
    // Predicated region
    $region10: #{tpu_custom_call.1} parent=1 // pred_check
      _
    $region11: #{tpu_custom_call.1} parent=1 // pred_check_branch
      %36 = sbr.rel (0) target = $region13
    $region12: #{tpu_custom_call.1} parent=1 // pred_region
      %s38 = ssub.s32 16, 16
      %39 = vsyncadd [#allocation6], %s38
      %s41 = sshll.u32 [#allocation7], 4
      %s42 = int_to_ptr.vmem [resolvable:$true] %s41
      %44 = dma.hbm_to_vmem [thread:$0]  %s2, 16, %s42, [#allocation6]
    $region13: #{tpu_custom_call.1} parent=1 // pred_fallthru
      _
    // Predicated region
    $region14: #{tpu_custom_call.1} parent=1 // pred_check
      _
    $region15: #{tpu_custom_call.1} parent=1 // pred_check_branch
      %46 = sbr.rel (0) target = $region17
    $region16: #{tpu_custom_call.1} parent=1 // pred_region
      %47 = dma.done [#allocation3], 256
    $region17: #{tpu_custom_call.1} parent=1 // pred_fallthru
      _
    // Predicated region
    $region18: #{tpu_custom_call.1} parent=1 // pred_check
      _
    $region19: #{tpu_custom_call.1} parent=1 // pred_check_branch
      %49 = sbr.rel (0) target = $region21
    $region20: #{tpu_custom_call.1} parent=1 // pred_region
      %50 = dma.done [#allocation6], 1024
    $region21: #{tpu_custom_call.1} parent=1 // pred_fallthru
      _
    // Predicated region
    $region22: #{tpu_custom_call.1} parent=1 // pred_check
      _
    $region23: #{tpu_custom_call.1} parent=1 // pred_check_branch
      %52 = sbr.rel (0) target = $region25
    $region24: #{tpu_custom_call.1} parent=1 // pred_region
      %53 = dma.done [#allocation6], 16
    $region25: #{tpu_custom_call.1} parent=1 // pred_fallthru
      _
    %v55 = vld [vmem:[#allocation2] sm:$0xf]
    %v56 = vld [vmem:[#allocation2 + $0x4] sm:$0xf]
    %v57 = vld [vmem:[#allocation2 + $0x8] sm:$0xf]
    %v58 = vld [vmem:[#allocation2 + $0xc] sm:$0xf]
    %v59 = vld [vmem:[#allocation5] sm:$0xf]
    %v60 = vld [vmem:[#allocation5 + $0x4] sm:$0xf]
    %v61 = vld [vmem:[#allocation5 + $0x8] sm:$0xf]
    %v62 = vld [vmem:[#allocation5 + $0xc] sm:$0xf]
    %v63 = vld [vmem:[#allocation5 + $0x10] sm:$0xf]
    %v64 = vld [vmem:[#allocation5 + $0x14] sm:$0xf]
    %v65 = vld [vmem:[#allocation5 + $0x18] sm:$0xf]
    %v66 = vld [vmem:[#allocation5 + $0x1c] sm:$0xf]
    %v67 = vld [vmem:[#allocation5 + $0x20] sm:$0xf]
    %v68 = vld [vmem:[#allocation5 + $0x24] sm:$0xf]
    %v69 = vld [vmem:[#allocation5 + $0x28] sm:$0xf]
    %v70 = vld [vmem:[#allocation5 + $0x2c] sm:$0xf]
    %v71 = vld [vmem:[#allocation5 + $0x30] sm:$0xf]
    %v72 = vld [vmem:[#allocation5 + $0x34] sm:$0xf]
    %v73 = vld [vmem:[#allocation5 + $0x38] sm:$0xf]
    %v74 = vld [vmem:[#allocation5 + $0x3c] sm:$0xf]
    %v75 = vld [vmem:[#allocation7] sm:$0x1]
    %v77 = vlaneseq
    %v78 = vshrl.u32 %v77, 7
    %v79 = vsub.s32 0, %v78
    %v80 = vrot.slane %v75, %v79
    %v86 = vunpack.c.l.b16 %v55
    %v87 = vunpack.c.l.b16 %v56
    %v88 = vunpack.c.l.b16 %v57
    %v89 = vunpack.c.l.b16 %v58
    %v90 = vpack.c.b16 %v87, %v86
    %v91 = vpack.c.b16 %v89, %v88
    %v110 = vunpack.c.l.b16 %v59
    %v111 = vunpack.c.l.b16 %v60
    %v112 = vunpack.c.l.b16 %v61
    %v113 = vunpack.c.l.b16 %v62
    %v114 = vunpack.c.l.b16 %v63
    %v115 = vunpack.c.l.b16 %v64
    %v116 = vunpack.c.l.b16 %v65
    %v117 = vunpack.c.l.b16 %v66
    %v118 = vunpack.c.l.b16 %v67
    %v119 = vunpack.c.l.b16 %v68
    %v120 = vunpack.c.l.b16 %v69
    %v121 = vunpack.c.l.b16 %v70
    %v122 = vunpack.c.l.b16 %v71
    %v123 = vunpack.c.l.b16 %v72
    %v124 = vunpack.c.l.b16 %v73
    %v125 = vunpack.c.l.b16 %v74
    %v126 = vpack.c.b16 %v111, %v110
    %v127 = vpack.c.b16 %v113, %v112
    %v128 = vpack.c.b16 %v115, %v114
    %v129 = vpack.c.b16 %v117, %v116
    %v130 = vpack.c.b16 %v119, %v118
    %v131 = vpack.c.b16 %v121, %v120
    %v132 = vpack.c.b16 %v123, %v122
    %v133 = vpack.c.b16 %v125, %v124
    %142 = vmatprep.subr.bf16.mxu0 0
    %143 = vmatpush1.bf16.msra.mxu0 %v126
    %144 = vmatprep.subr.bf16.mxu0 0
    %145 = vmatpush1.bf16.msra.mxu0 %v127
    %146 = vmatprep.subr.bf16.mxu0 0
    %147 = vmatpush1.bf16.msra.mxu0 %v128
    %148 = vmatprep.subr.bf16.mxu0 0
    %149 = vmatpush1.bf16.msra.mxu0 %v129
    %150 = vmatprep.subr.bf16.mxu0 0
    %151 = vmatpush1.bf16.msra.mxu0 %v130
    %152 = vmatprep.subr.bf16.mxu0 0
    %153 = vmatpush1.bf16.msra.mxu0 %v131
    %154 = vmatprep.subr.bf16.mxu0 0
    %155 = vmatpush1.bf16.msra.mxu0 %v132
    %156 = vmatprep.subr.bf16.mxu0 0
    %157 = vmatpush1.bf16.msra.mxu0 %v133
    %158 = vmatprep.subr.bf16.mxu0 0
    %159 = vmatpush1.bf16.msra.mxu0 0
    %160 = vmatprep.subr.bf16.mxu0 0
    %161 = vmatpush1.bf16.msra.mxu0 0
    %162 = vmatprep.subr.bf16.mxu0 0
    %163 = vmatpush1.bf16.msra.mxu0 0
    %164 = vmatprep.subr.bf16.mxu0 0
    %165 = vmatpush1.bf16.msra.mxu0 0
    %166 = vmatprep.subr.bf16.mxu0 0
    %167 = vmatpush1.bf16.msra.mxu0 0
    %168 = vmatprep.subr.bf16.mxu0 0
    %169 = vmatpush1.bf16.msra.mxu0 0
    %170 = vmatprep.subr.bf16.mxu0 0
    %171 = vmatpush1.bf16.msra.mxu0 0
    %172 = vmatprep.subr.bf16.mxu0 0
    %173 = vmatpush1.bf16.msra.mxu0 0
    %174 = vmatprep.mubr.bf16.mxu0 0
    %175 = vmatmul.mubr.bf16.gmra.mrb[0].mxu0 %v90
    %v176 = vpop.f32.mrb[0].mxu0
    %v177 = vadd.f32 %v80, %v176
    %v178 = vpop.f32.mrb[0].mxu0
    %v179 = vpop.f32.mrb[0].mxu0
    %v180 = vadd.f32 %v80, %v179
    %v181 = vpop.f32.mrb[0].mxu0
    %182 = vmatprep.mubr.bf16.mxu0 0
    %183 = vmatmul.mubr.bf16.gmra.mrb[0].mxu0 %v91
    %v184 = vpop.f32.mrb[0].mxu0
    %v185 = vadd.f32 %v80, %v184
    %v186 = vpop.f32.mrb[0].mxu0
    %v187 = vpop.f32.mrb[0].mxu0
    %v188 = vadd.f32 %v80, %v187
    %v189 = vpop.f32.mrb[0].mxu0
    %190 = vdwg.mxu0
    %v191 = vmul.f32 %v177, 0.5
    %v192 = vmul.f32 %v180, 0.5
    %v193 = vmul.f32 %v185, 0.5
    %v194 = vmul.f32 %v188, 0.5
    %v195 = vmul.f32 %v177, 0.70710677
    %v196 = vmul.f32 %v180, 0.70710677
    %v197 = vmul.f32 %v185, 0.70710677
    %v198 = vmul.f32 %v188, 0.70710677
    %v199 = verf.f32.pop %v195
    %v200 = verf.f32.pop %v196
    %v201 = verf.f32.pop %v197
    %v202 = verf.f32.pop %v198
    %v203 = vadd.f32 %v199, 1.0
    %v204 = vadd.f32 %v200, 1.0
    %v205 = vadd.f32 %v201, 1.0
    %v206 = vadd.f32 %v202, 1.0
    %v207 = vmul.f32 %v191, %v203
    %v208 = vmul.f32 %v192, %v204
    %v209 = vmul.f32 %v193, %v205
    %v210 = vmul.f32 %v194, %v206
    %v211 = vadd.f32 %v207, %v208
    %v212 = vadd.f32 %v211, %v209
    %v213 = vadd.f32 %v212, %v210
    %v214 = vrot.slane %v213, 4
    %v215 = vadd.f32 %v213, %v214
    %v216 = vrot.slane %v215, 2
    %v217 = vadd.f32 %v215, %v216
    %v218 = vrot.slane %v217, 1
    %v219 = vadd.f32 %v217, %v218
    %v220 = vmul.f32 %v207, %v207
    %v221 = vmul.f32 %v208, %v208
    %v222 = vmul.f32 %v209, %v209
    %v223 = vmul.f32 %v210, %v210
    %v224 = vadd.f32 %v220, %v221
    %v225 = vadd.f32 %v224, %v222
    %v226 = vadd.f32 %v225, %v223
    %v227 = vrot.slane %v226, 4
    %v228 = vadd.f32 %v226, %v227
    %v229 = vrot.slane %v228, 2
    %v230 = vadd.f32 %v228, %v229
    %v231 = vrot.slane %v230, 1
    %v232 = vadd.f32 %v230, %v231
    %vm233 = vcmask 1040384
    %v234 = vsel %vm233, %v219, %v232
    %235 = vst [vmem:[#allocation8] sm:$0x3] %v234
    // Predicated region
    $region26: #{tpu_custom_call.1} parent=1 // pred_check
      _
    $region27: #{tpu_custom_call.1} parent=1 // pred_check_branch
      %237 = sbr.rel (0) target = $region29
    $region28: #{tpu_custom_call.1} parent=1 // pred_region
      %s239 = ssub.s32 32, 32
      %240 = vsyncadd [#allocation4], %s239
      %s242 = sshll.u32 [#allocation8], 4
      %s243 = int_to_ptr.vmem [resolvable:$true] %s242
      %245 = dma.vmem_to_hbm [thread:$0]  %s243, 32, %s3, [#allocation4]
    $region29: #{tpu_custom_call.1} parent=1 // pred_fallthru
      _
    // Predicated region
    $region30: #{tpu_custom_call.1} parent=1 // pred_check
      _
    $region31: #{tpu_custom_call.1} parent=1 // pred_check_branch
      %247 = sbr.rel (0) target = $region33
    $region32: #{tpu_custom_call.1} parent=1 // pred_region
      %248 = dma.done [#allocation4], 32
    $region33: #{tpu_custom_call.1} parent=1 // pred_fallthru
      _
    %249 = vsyncpa [#allocation3], 1
    %250 = vsyncpa [#allocation6], 1
    %251 = vsyncpa [#allocation4], 1

</llo_original>
